<compile_context>
chip_gen: v5e
topology: v5e:2x2
jax: 0.10.0
libtpu: 0.0.40
codegen_flags: <defaults>
</compile_context>

<pallas_src>
import jax
import jax.numpy as jnp
from jax.experimental import pallas as pl
from jax.experimental.pallas import tpu as pltpu


def _mlp_outcome_kernel(emb_ref, wt_ref, bias_ref, out_ref):
    """Batch-invariant tanh + tiny linear, broadcast over the batch tile.

    emb_ref  : VMEM (1, D)       pre-gathered [alice_emb[0], bob_emb[0]], D = 2*nembed
    wt_ref   : VMEM (2, D)       linear weight (is_agreement row dropped), output-major
    bias_ref : VMEM (2, 1)       linear bias
    out_ref  : VMEM (2, tile_b)  output slab, batch on the lane axis
    """
    t = jnp.tanh(emb_ref[...])                                    # (1, D)  EUP
    prod = t * wt_ref[...]                                        # (2, D)  VPU (sublane bcast)
    y = jnp.sum(prod, axis=-1, keepdims=True) + bias_ref[...]     # (2, 1)  XLU lane reduce
    out_ref[...] = jnp.broadcast_to(y, out_ref.shape)             # (2, tile_b) lane-dense store


def init_params(key, n, nembed, init_range):
    """Deterministic synthetic init mirroring the PyTorch __init__."""
    k1, k2, k3 = jax.random.split(key, 3)
    return {
        # nn.Embedding(n, nembed).weight.uniform_(-init_range, init_range)
        "alice_emb": jax.random.uniform(k1, (n, nembed), jnp.float32,
                                        -init_range, init_range),
        "bob_emb": jax.random.uniform(k2, (n, nembed), jnp.float32,
                                      -init_range, init_range),
        # nn.Linear(2*nembed+1, 2): weight uniform, bias filled with 0.
        # Stored as (in_features, out_features).
        "enc_w": jax.random.uniform(k3, (2 * nembed + 1, 2), jnp.float32,
                                    -init_range, init_range),
        "enc_b": jnp.zeros((2,), jnp.float32),
    }


def mlp_outcome_encoder(ctx, params):
    """Pallas implementation of MlpOutcomeEncoder.forward.

    ctx: (k, batch) int32 context tokens. Only ctx.shape[1] (batch) is used,
         matching the reference forward (which hard-codes outcomes to 0).
    Returns: (1, batch, 2) float32 — mirrors .unsqueeze(0).
    """
    batch = ctx.shape[1]
    nembed = params["alice_emb"].shape[1]
    D = 2 * nembed

    # Pre-gather the (compile-time index 0) embedding rows into one packed row,
    # in the same [alice, bob] order as the weight rows below.
    emb = jnp.concatenate([params["alice_emb"][0], params["bob_emb"][0]]).reshape(1, D)
    # Drop the is_agreement weight row (tanh(0) == 0 -> exact no-op); output-major layout.
    wt = params["enc_w"][1:, :].T                  # (2, D)
    bias = params["enc_b"].reshape(2, 1)           # (2, 1)

    # Grid over the batch (lane) axis of the (2, batch) output slab.
    if batch <= 4096:
        tile_b, grid = batch, (1,)
    else:
        tile_b, grid = 4096, (pl.cdiv(batch, 4096),)

    out_2b = pl.pallas_call(
        _mlp_outcome_kernel,
        out_shape=jax.ShapeDtypeStruct((2, batch), jnp.float32),
        grid=grid,
        in_specs=[
            pl.BlockSpec((1, D), lambda i: (0, 0)),
            pl.BlockSpec((2, D), lambda i: (0, 0)),
            pl.BlockSpec((2, 1), lambda i: (0, 0)),
        ],
        out_specs=pl.BlockSpec((2, tile_b), lambda i: (0, i)),
        compiler_params=pltpu.CompilerParams(dimension_semantics=("parallel",)),
    )(emb, wt, bias)

    # (2, batch) -> (batch, 2) -> (1, batch, 2)
    return out_2b.T[None, :, :]


def reference(ctx, params):
    """Plain-JAX reference of the (intended) forward semantics."""
    batch = ctx.shape[1]
    nembed = params["alice_emb"].shape[1]
    alice_emb = jnp.broadcast_to(params["alice_emb"][0], (batch, nembed))
    bob_emb = jnp.broadcast_to(params["bob_emb"][0], (batch, nembed))
    is_agreement = jnp.zeros((batch, 1), jnp.float32)
    h = jnp.concatenate([is_agreement, alice_emb, bob_emb], axis=1)
    y = jnp.tanh(h) @ params["enc_w"] + params["enc_b"]
    return y[None]


if __name__ == "__main__":
    # Small shapes consistent with the module: n token values, k context tokens,
    # nembed embedding dim, batch from ctx.size(1).
    n, k, nembed, init_range = 6, 6, 32, 0.1
    batch = 8

    key = jax.random.PRNGKey(0)
    k_params, k_ctx = jax.random.split(key)
    params = init_params(k_params, n, nembed, init_range)
    ctx = jax.random.randint(k_ctx, (k, batch), 0, n, dtype=jnp.int32)

    out = mlp_outcome_encoder(ctx, params)
    out = jax.block_until_ready(out)

    ref = reference(ctx, params)
    assert out.shape == (1, batch, 2), out.shape
    assert jnp.allclose(out, ref, atol=1e-5, rtol=1e-5), (out, ref)

    # TODO(synk): the original torch forward is syntactically broken
    # (list.transpose on a Python list, Embedding called on a Python int);
    # this kernel implements the evident intended semantics with the
    # hard-coded (0, 0, 0) outcomes.
    print("KERNEL_OK")
</pallas_src>

<mosaic_0001>
module attributes {stable_mosaic.version = 11 : i64} {
  func.func @_mlp_outcome_kernel(%arg0: i32, %arg1: memref<1x64xf32, #tpu.memory_space<vmem>>, %arg2: memref<2x64xf32, #tpu.memory_space<vmem>>, %arg3: memref<2x1xf32, #tpu.memory_space<vmem>>, %arg4: memref<2x8xf32, #tpu.memory_space<vmem>>) attributes {dimension_semantics = [#tpu.dimension_semantics<parallel>], iteration_bounds = array<i64: 1>, scalar_prefetch = 0 : i64, scratch_operands = 0 : i64, tpu.core_type = #tpu.core_type<tc>, window_params = [{pipeline_mode = #tpu.pipeline_mode<synchronous>, transform_indices = @transform_0, window_bounds = array<i64: 1, 64>}, {pipeline_mode = #tpu.pipeline_mode<synchronous>, transform_indices = @transform_1, window_bounds = array<i64: 2, 64>}, {pipeline_mode = #tpu.pipeline_mode<synchronous>, transform_indices = @transform_2, window_bounds = array<i64: 2, 1>}, {transform_indices = @transform_3, window_bounds = array<i64: 2, 8>}]} {
    %c0 = arith.constant 0 : index
    %c0_0 = arith.constant 0 : index
    %0 = vector.load %arg1[%c0, %c0_0] : memref<1x64xf32, #tpu.memory_space<vmem>>, vector<1x64xf32>
    %1 = math.tanh %0 : vector<1x64xf32>
    %c0_1 = arith.constant 0 : index
    %c0_2 = arith.constant 0 : index
    %2 = vector.load %arg2[%c0_1, %c0_2] : memref<2x64xf32, #tpu.memory_space<vmem>>, vector<2x64xf32>
    %3 = vector.broadcast %1 : vector<1x64xf32> to vector<2x64xf32>
    %4 = arith.mulf %3, %2 : vector<2x64xf32>
    %cst = arith.constant dense<0.000000e+00> : vector<2xf32>
    %5 = vector.multi_reduction <add>, %4, %cst [1] : vector<2x64xf32> to vector<2xf32>
    %6 = vector.shape_cast %5 : vector<2xf32> to vector<2x1xf32>
    %c0_3 = arith.constant 0 : index
    %c0_4 = arith.constant 0 : index
    %7 = vector.load %arg3[%c0_3, %c0_4] : memref<2x1xf32, #tpu.memory_space<vmem>>, vector<2x1xf32>
    %8 = arith.addf %6, %7 : vector<2x1xf32>
    %9 = vector.shape_cast %8 : vector<2x1xf32> to vector<2x1xf32>
    %10 = vector.broadcast %9 : vector<2x1xf32> to vector<2x8xf32>
    %c0_5 = arith.constant 0 : index
    %c0_6 = arith.constant 0 : index
    %11 = vector.load %arg4[%c0_5, %c0_6] : memref<2x8xf32, #tpu.memory_space<vmem>>, vector<2x8xf32>
    tpu.vector_store %arg4[%c0_5, %c0_6], %10 {strides = array<i32>} : memref<2x8xf32, #tpu.memory_space<vmem>>, vector<2x8xf32>,
    return
  }
  func.func @transform_0(%arg0: i32) -> (i32, i32) {
    %c0_i32 = arith.constant 0 : i32
    %c0_i32_0 = arith.constant 0 : i32
    %c0_i32_1 = arith.constant 0 : i32
    return %c0_i32, %c0_i32_0 : i32, i32
  }
  func.func @transform_1(%arg0: i32) -> (i32, i32) {
    %c0_i32 = arith.constant 0 : i32
    %c0_i32_0 = arith.constant 0 : i32
    %c0_i32_1 = arith.constant 0 : i32
    return %c0_i32, %c0_i32_0 : i32, i32
  }
  func.func @transform_2(%arg0: i32) -> (i32, i32) {
    %c0_i32 = arith.constant 0 : i32
    %c0_i32_0 = arith.constant 0 : i32
    %c0_i32_1 = arith.constant 0 : i32
    return %c0_i32, %c0_i32_0 : i32, i32
  }
  func.func @transform_3(%arg0: i32) -> (i32, i32) {
    %c0_i32 = arith.constant 0 : i32
    %c0_i32_0 = arith.constant 0 : i32
    return %c0_i32, %arg0 : i32, i32
  }
}

</mosaic_0001>

<llo_original>
// kernel: tpu_custom_call.1
$region0: #{tpu_custom_call.1}
  #allocation0 [shape = 'u32[]', space=smem, size = 0x4, offset = 0x4, fixed_abs, tag = 'smem constant byte address 0x4 - core index']
  #allocation1 [shape = 'u32[72,128]{1,0:T(1,128)}', space=vmem, size = 0x9000, scoped, tag = 'internal scratch']
  %s0 = inlined_call_operand.vmem [shape: f32[1,64], index: 0, kind: input, shape index: {}]
  %s1 = inlined_call_operand.vmem [shape: f32[2,64], index: 1, kind: input, shape index: {}]
  %s2 = inlined_call_operand.vmem [shape: f32[2,1], index: 2, kind: input, shape index: {}]
  %s3 = inlined_call_operand.hbm [shape: f32[2,8], index: 3, kind: output, shape index: {}]
  %s4 = sld [smem:[#allocation0]]
  $region22: #{tpu_custom_call.1} parent=0
    _
  %s6 = ssub.s32 1, %s4
  %s7 = scalar_select 0, %s6, %s4
  $region1: #{tpu_custom_call.1} parent=0
    #allocation2 [shape = 'u8[1024]{0}', space=vmem, size = 0x400, scoped, tag = 'output window, operand 0, single buffered']
    #allocation3 [shape = 's32[1]{0}', space=sflag, size = 0x4, scoped, tag = 'scoped memory for tpu_custom_call.1']
    %8 = vsyncpa [#allocation3], 0
    // Predicated region
    $region2: #{tpu_custom_call.1} parent=1 // pred_check
      _
    $region3: #{tpu_custom_call.1} parent=1 // pred_check_branch
      %10 = sbr.rel (0) target = $region5
    $region4: #{tpu_custom_call.1} parent=1 // pred_region
      _
    $region5: #{tpu_custom_call.1} parent=1 // pred_fallthru
      _
    // Predicated region
    $region6: #{tpu_custom_call.1} parent=1 // pred_check
      _
    $region7: #{tpu_custom_call.1} parent=1 // pred_check_branch
      %12 = sbr.rel (0) target = $region9
    $region8: #{tpu_custom_call.1} parent=1 // pred_region
      _
    $region9: #{tpu_custom_call.1} parent=1 // pred_fallthru
      _
    // Predicated region
    $region10: #{tpu_custom_call.1} parent=1 // pred_check
      _
    $region11: #{tpu_custom_call.1} parent=1 // pred_check_branch
      %14 = sbr.rel (0) target = $region13
    $region12: #{tpu_custom_call.1} parent=1 // pred_region
      _
    $region13: #{tpu_custom_call.1} parent=1 // pred_fallthru
      _
    %v15 = vld [vmem:[%s0] sm:$0x1]
    %v16 = vtanh.pop %v15
    %v17 = vld [vmem:[%s1] sm:$0x3]
    %v19 = vperm.slane %v16, 0
    %v21 = vmul.f32 %v19, %v17
    %vm22 = vcmask 517120
    %v23 = vsel %vm22, %v21, 0.0
    %24 = vadd.xlane.f32.xlu0 %v23
    %v25 = vpop.xlane.xlu0 %24
    %v26 = vld [vmem:[%s2] sm:$0x3]
    %v27 = vadd.f32 %v25, %v26
    %29 = vset.pattern.permute.xlu0 0
    %30 = vperm.xlu0 %29, %v27
    %v31 = vpop.permute.xlu0 %30
    %vm33 = vcmask 58368
    %34 = vst.msk [vmem:[#allocation2] sm:$0x3] %vm33, %v31
    // Predicated region
    $region14: #{tpu_custom_call.1} parent=1 // pred_check
      _
    $region15: #{tpu_custom_call.1} parent=1 // pred_check_branch
      %36 = sbr.rel (0) target = $region17
    $region16: #{tpu_custom_call.1} parent=1 // pred_region
      %38 = vsyncadd [#allocation3], 0
      %s40 = sshll.u32 [#allocation2], 4
      %s41 = int_to_ptr.vmem [resolvable:$true] %s40
      %s42 = sshll.u32 %s3, 4
      %s43 = int_to_ptr.hbm [resolvable:$true] %s42
      %45 = dma.vmem_to_hbm [thread:$0]  %s41, 32, %s43, [#allocation3]
    $region17: #{tpu_custom_call.1} parent=1 // pred_fallthru
      _
    // Predicated region
    $region18: #{tpu_custom_call.1} parent=1 // pred_check
      _
    $region19: #{tpu_custom_call.1} parent=1 // pred_check_branch
      %47 = sbr.rel (0) target = $region21
    $region20: #{tpu_custom_call.1} parent=1 // pred_region
      %49 = dma.done [#allocation3], 32
    $region21: #{tpu_custom_call.1} parent=1 // pred_fallthru
      _
    %50 = vsyncpa [#allocation3], 1

</llo_original>
